<compile_context>
chip_gen: v7x
topology: tpu7x:2x2x1
jax: 0.10.0
libtpu: 0.0.40
codegen_flags: <defaults>
</compile_context>

<pallas_src>
import functools

import jax
import jax.numpy as jnp
import numpy as np
from jax import lax
from jax.experimental import pallas as pl
from jax.experimental.pallas import tpu as pltpu
from jax.scipy.special import logsumexp


def _round_up(x, m):
    return ((x + m - 1) // m) * m


# ----------------------------- Pallas linear kernel -----------------------------
# y = act(x @ w + b) with bf16 MXU operands, f32 accumulation in a VMEM scratch,
# grid = (row tiles, col tiles, K tiles); the K axis is 'arbitrary' (reduction).

def _linear_kernel(x_ref, w_ref, b_ref, o_ref, acc_ref, *, activation):
    @pl.when(pl.program_id(2) == 0)
    def _():
        acc_ref[...] = jnp.zeros_like(acc_ref)

    acc_ref[...] += jnp.dot(x_ref[...], w_ref[...],
                            preferred_element_type=jnp.float32)

    @pl.when(pl.program_id(2) == pl.num_programs(2) - 1)
    def _():
        h = acc_ref[...] + b_ref[...]
        if activation == "relu":
            h = jnp.maximum(h, 0.0)
        o_ref[...] = h.astype(o_ref.dtype)


def pallas_linear(x, w, b, activation=None, out_dtype=jnp.float32, *,
                  block_rows=512, block_cols=1024, block_k=1024):
    """y = act(x @ w + b); x: [N, K], w: [K, M], b: [M].  bf16 MXU operands, f32 accumulate."""
    n, k = x.shape
    k2, m = w.shape
    assert k == k2

    # Tile sizes: full 128-multiples (never sub-(16,128) bf16 tiles / lane-sparse stores).
    bm = block_rows if n >= block_rows else _round_up(n, 128)
    bn = block_cols if m >= block_cols else _round_up(m, 128)
    bk = block_k if k >= block_k else _round_up(k, 128)
    n_p, m_p, k_p = _round_up(n, bm), _round_up(m, bn), _round_up(k, bk)

    xb = x.astype(jnp.bfloat16)
    wb = w.astype(jnp.bfloat16)
    bb = b.reshape(1, m).astype(jnp.float32)
    if (n_p - n) or (k_p - k):
        xb = jnp.pad(xb, ((0, n_p - n), (0, k_p - k)))
    if (k_p - k) or (m_p - m):
        wb = jnp.pad(wb, ((0, k_p - k), (0, m_p - m)))
    if m_p - m:
        bb = jnp.pad(bb, ((0, 0), (0, m_p - m)))

    out = pl.pallas_call(
        functools.partial(_linear_kernel, activation=activation),
        out_shape=jax.ShapeDtypeStruct((n_p, m_p), out_dtype),
        grid_spec=pltpu.PrefetchScalarGridSpec(
            num_scalar_prefetch=0,
            grid=(n_p // bm, m_p // bn, k_p // bk),
            in_specs=[
                pl.BlockSpec((bm, bk), lambda i, j, kk: (i, kk)),
                pl.BlockSpec((bk, bn), lambda i, j, kk: (kk, j)),
                pl.BlockSpec((1, bn), lambda i, j, kk: (0, j)),
            ],
            out_specs=pl.BlockSpec((bm, bn), lambda i, j, kk: (i, j)),
            scratch_shapes=[pltpu.VMEM((bm, bn), jnp.float32)],
        ),
        compiler_params=pltpu.CompilerParams(
            dimension_semantics=("parallel", "parallel", "arbitrary"),
            vmem_limit_bytes=48 * 1024 * 1024,   # <= v7x physical VMEM with headroom
        ),
    )(xb, wb, bb)

    if (n_p - n) or (m_p - m):
        out = out[:n, :m]
    return out


def jnp_linear(x, w, b, activation=None, out_dtype=jnp.float32):
    """Pure-JAX reference for pallas_linear (same bf16-operand / f32-accumulate / cast math)."""
    h = jnp.dot(x.astype(jnp.bfloat16), w.astype(jnp.bfloat16),
                preferred_element_type=jnp.float32) + b[None, :].astype(jnp.float32)
    if activation == "relu":
        h = jnp.maximum(h, 0.0)
    return h.astype(out_dtype)


# ------------------- fused head (mid_linear -> classifier) + CRF NLL -------------------
# torchcrf.CRF(batch_first=True).forward semantics on emissions computed in-VMEM:
#   llh[b] = gold_path_score(b) - log_partition(b);  loss = -mean_b(llh)
# All CRF state lives in the lane-dense (T, Bb) layout (batch block on the 128-lane axis).

def _head_crf_kernel(x_ref, midw_ref, midb_ref, clswt_ref, clsbt_ref,
                     tags_ref, mask_ref, startt_ref, trans_ref, endt_ref,
                     llh_ref, emis_sc):
    S, Bb, H = x_ref.shape
    T = trans_ref.shape[0]

    # ---- fused head: mid_linear (Linear + ReLU, dropout = identity) + classifier ----
    # x rows are ordered r = i*Bb + b, so emission columns below are c = i*Bb + b.
    x2d = x_ref[...].reshape(S * Bb, H)                     # bf16; free reshape (Bb % 8 == 0)
    mid = jnp.dot(x2d, midw_ref[...], preferred_element_type=jnp.float32)
    mid = jnp.maximum(mid + midb_ref[...], 0.0)             # (S*Bb, MID) f32
    # classifier computed directly in the transposed, lane-dense layout (T, S*Bb)
    emis_t = lax.dot_general(clswt_ref[...], mid.astype(jnp.bfloat16),
                             (((1,), (1,)), ((), ())),
                             preferred_element_type=jnp.float32) + clsbt_ref[...]

    # Stage per-step (T, Bb) emission tiles (one vreg per step when Bb == 128) so the
    # rolled recursion can use a leading-dim dynamic index.
    for i in range(S):
        emis_sc[i] = emis_t[:, i * Bb:(i + 1) * Bb]

    start_t = startt_ref[...]                               # (T, 1)
    end_t = endt_ref[...]                                    # (T, 1)
    trans = trans_ref[...]                                   # (T, T)
    trans_bc = jnp.broadcast_to(trans[:, :, None], (T, T, Bb))   # hoisted broadcast

    tag_lane = lax.broadcasted_iota(jnp.int32, (T, Bb), 0)        # tag id per sublane row

    def onehot(tag_row):                                     # tag_row: (1, Bb) int32
        return (tag_lane == tag_row).astype(jnp.float32)     # (T, Bb)

    e0 = emis_sc[0]                                          # (T, Bb)
    oh0 = onehot(tags_ref[0:1, :])
    alpha0 = start_t + e0                                    # forward-algorithm carry
    score0 = jnp.sum(oh0 * alpha0, axis=0, keepdims=True)    # start[t0] + emis[0, t0]

    def step(i, carry):
        alpha, score, last_oh, oh_prev = carry
        e_i = emis_sc[i]                                     # (T, Bb)
        tag_i = tags_ref[pl.ds(i, 1), :]                     # (1, Bb) int32
        m_i = mask_ref[pl.ds(i, 1), :]                       # (1, Bb) f32
        oh_i = onehot(tag_i)

        # gold path: (trans[tags[i-1], tags[i]] + emis[i, tags[i]]) * mask[i]
        trans_sel = jnp.sum(trans_bc * oh_prev[:, None, :], axis=0)           # (T, Bb)
        step_sc = jnp.sum((trans_sel + e_i) * oh_i, axis=0, keepdims=True)    # (1, Bb)
        score = score + m_i * step_sc
        last_oh = jnp.where(m_i > 0.0, oh_i, last_oh)

        # partition: alpha'[n, b] = logsumexp_p(alpha[p, b] + trans[p, n]) + e_i[n, b]
        sc = alpha[:, None, :] + trans_bc                    # (T_prev, T_next, Bb)
        mx = jnp.max(sc, axis=0, keepdims=True)              # (1, T, Bb)
        lse = jnp.log(jnp.sum(jnp.exp(sc - mx), axis=0)) + mx[0]              # (T, Bb)
        alpha = jnp.where(m_i > 0.0, lse + e_i, alpha)
        return alpha, score, last_oh, oh_i

    if S > 1:
        alpha, score, last_oh, _ = lax.fori_loop(
            1, S, step, (alpha0, score0, oh0, oh0), unroll=min(8, S - 1))
    else:
        alpha, score, last_oh = alpha0, score0, oh0

    score = score + jnp.sum(last_oh * end_t, axis=0, keepdims=True)           # + end[t_last]
    alpha = alpha + end_t
    mx = jnp.max(alpha, axis=0, keepdims=True)                                # (1, Bb)
    denom = mx + jnp.log(jnp.sum(jnp.exp(alpha - mx), axis=0, keepdims=True))
    llh_ref[...] = (score - denom)[None]                                      # (1, 1, Bb)


def crf_head_loss(seq_out, mid_w, mid_b, cls_w, cls_b, tags, mask,
                  start, trans, end, *, batch_block=128):
    """-CRF(classifier(relu(mid(seq_out))), tags, mask, reduction='mean'), fully fused."""
    B, S, H = seq_out.shape
    MID = mid_w.shape[1]
    T = cls_w.shape[1]

    # Batch block = the CRF lane axis. Prefer 128 lanes; keep >=2 grid steps when the batch
    # allows it so both v7x TensorCores get work. (For BERT-scale S/H, re-budget Bb against
    # 64 MiB VMEM on v7x: the double-buffered (S, Bb, H) x tile dominates.)
    Bb = min(batch_block, _round_up(B, 8))
    if Bb == _round_up(B, 8) and B >= 32:
        Bb = _round_up((B + 1) // 2, 8)
    Bb = _round_up(Bb, 8)
    Bp = _round_up(B, Bb)
    nb = Bp // Bb
    Sp = _round_up(S, 8)     # masked-out padded positions do not change the CRF NLL

    x = seq_out.astype(jnp.bfloat16)
    tags_i = tags.astype(jnp.int32)
    maskf = mask.astype(jnp.float32)
    if (Bp != B) or (Sp != S):
        x = jnp.pad(x, ((0, Bp - B), (0, Sp - S), (0, 0)))
        tags_i = jnp.pad(tags_i, ((0, Bp - B), (0, Sp - S)))
        maskf = jnp.pad(maskf, ((0, Bp - B), (0, Sp - S)))
        maskf = maskf.at[B:, 0].set(1.0)     # keep padded sequences numerically sane

    # Re-layout so batch maps to lanes inside the kernel:
    #   x_r[k*Sp + i, b, :] = x[k*Bb + b, i, :];  tags_r / mask_r analogous.
    x_r = x.reshape(nb, Bb, Sp, H).transpose(0, 2, 1, 3).reshape(nb * Sp, Bb, H)
    tags_r = tags_i.reshape(nb, Bb, Sp).transpose(0, 2, 1).reshape(nb * Sp, Bb)
    mask_r = maskf.reshape(nb, Bb, Sp).transpose(0, 2, 1).reshape(nb * Sp, Bb)

    llh = pl.pallas_call(
        _head_crf_kernel,
        out_shape=jax.ShapeDtypeStruct((nb, 1, Bb), jnp.float32),
        grid_spec=pltpu.PrefetchScalarGridSpec(
            num_scalar_prefetch=0,
            grid=(nb,),
            in_specs=[
                pl.BlockSpec((Sp, Bb, H), lambda k: (k, 0, 0)),
                pl.BlockSpec((H, MID), lambda k: (0, 0)),
                pl.BlockSpec((1, MID), lambda k: (0, 0)),
                pl.BlockSpec((T, MID), lambda k: (0, 0)),
                pl.BlockSpec((T, 1), lambda k: (0, 0)),
                pl.BlockSpec((Sp, Bb), lambda k: (k, 0)),
                pl.BlockSpec((Sp, Bb), lambda k: (k, 0)),
                pl.BlockSpec((T, 1), lambda k: (0, 0)),
                pl.BlockSpec((T, T), lambda k: (0, 0)),
                pl.BlockSpec((T, 1), lambda k: (0, 0)),
            ],
            out_specs=pl.BlockSpec((1, 1, Bb), lambda k: (k, 0, 0)),
            scratch_shapes=[pltpu.VMEM((Sp, T, Bb), jnp.float32)],
        ),
        compiler_params=pltpu.CompilerParams(
            dimension_semantics=("parallel",),
            vmem_limit_bytes=48 * 1024 * 1024,
        ),
    )(x_r,
      mid_w.astype(jnp.bfloat16), mid_b.reshape(1, MID).astype(jnp.float32),
      cls_w.T.astype(jnp.bfloat16), cls_b.reshape(T, 1).astype(jnp.float32),
      tags_r, mask_r,
      start.reshape(T, 1).astype(jnp.float32),
      trans.astype(jnp.float32),
      end.reshape(T, 1).astype(jnp.float32))

    return -jnp.mean(llh.reshape(Bp)[:B])


# ------------------------------- pure-JAX references -------------------------------

def crf_nll_ref(emissions, tags, mask, start, trans, end):
    """Pure-JAX reference mirroring torchcrf (reduction='mean') semantics."""
    B, S, T = emissions.shape
    maskf = mask.astype(jnp.float32)
    bidx = jnp.arange(B)
    score = start[tags[:, 0]] + emissions[bidx, 0, tags[:, 0]]
    for i in range(1, S):
        score = score + (trans[tags[:, i - 1], tags[:, i]]
                         + emissions[bidx, i, tags[:, i]]) * maskf[:, i]
    seq_ends = mask.sum(axis=1).astype(jnp.int32) - 1
    score = score + end[tags[bidx, seq_ends]]
    alpha = start[None, :] + emissions[:, 0]
    for i in range(1, S):
        nxt = logsumexp(alpha[:, :, None] + trans[None] + emissions[:, i][:, None, :], axis=1)
        alpha = jnp.where(maskf[:, i][:, None] > 0, nxt, alpha)
    denom = logsumexp(alpha + end[None, :], axis=1)
    return -(score - denom).mean()


def crf_head_loss_ref(seq_out, mid_w, mid_b, cls_w, cls_b, tags, mask, start, trans, end):
    B, S, H = seq_out.shape
    x2d = seq_out.reshape(B * S, H)
    mid = jnp_linear(x2d, mid_w, mid_b, activation="relu")
    emissions = jnp_linear(mid, cls_w, cls_b).reshape(B, S, -1)
    return crf_nll_ref(emissions, tags, mask, start, trans, end)


# ----------------------------- glue: stand-in BERT + model -----------------------------

def layer_norm(x, g, b, eps=1e-12):
    mu = jnp.mean(x, axis=-1, keepdims=True)
    var = jnp.mean(jnp.square(x - mu), axis=-1, keepdims=True)
    return (x - mu) * lax.rsqrt(var + eps) * g + b


def bert_encoder(params, token_ids, attention_masks, token_type_ids, heads, linear_fn):
    B, S = token_ids.shape
    H = params["word_emb"].shape[1]
    hd = H // heads
    x = (params["word_emb"][token_ids]
         + params["pos_emb"][None, :, :]
         + params["type_emb"][token_type_ids])
    x = layer_norm(x, params["emb_ln_g"], params["emb_ln_b"])
    x2d = x.reshape(B * S, H)
    attn_bias = (1.0 - attention_masks[:, None, None, :].astype(jnp.float32)) * -1e9

    def split_heads(t):
        return t.reshape(B, S, heads, hd).transpose(0, 2, 1, 3)

    for lp in params["layers"]:
        # fused Q/K/V projection: 1 kernel launch, 1 DMA of x, lane-dense 3H bf16 output
        w_qkv = jnp.concatenate([lp["wq"], lp["wk"], lp["wv"]], axis=1)
        b_qkv = jnp.concatenate([lp["bq"], lp["bk"], lp["bv"]], axis=0)
        qkv = linear_fn(x2d, w_qkv, b_qkv, out_dtype=jnp.bfloat16)
        q = split_heads(qkv[:, :H])
        k = split_heads(qkv[:, H:2 * H])
        v = split_heads(qkv[:, 2 * H:])
        scores = jnp.einsum("bhqd,bhkd->bhqk", q, k,
                            preferred_element_type=jnp.float32) / np.sqrt(hd)
        probs = jax.nn.softmax(scores + attn_bias, axis=-1)
        ctx = jnp.einsum("bhqk,bhkd->bhqd", probs, v,
                         preferred_element_type=jnp.float32)
        ctx = ctx.transpose(0, 2, 1, 3).reshape(B * S, H)
        attn_out = linear_fn(ctx, lp["wo"], lp["bo"])
        x2d = layer_norm(x2d + attn_out, lp["ln1_g"], lp["ln1_b"])
        ff = linear_fn(x2d, lp["wi"], lp["bi"], activation="relu", out_dtype=jnp.bfloat16)
        ff = linear_fn(ff, lp["wf"], lp["bf"])
        x2d = layer_norm(x2d + ff, lp["ln2_g"], lp["ln2_b"])
    return x2d.reshape(B, S, H)


def crf_model_forward(params, token_ids, attention_masks, token_type_ids, labels,
                      heads=2, linear_fn=pallas_linear, head_crf_fn=crf_head_loss):
    """== CRFModel.forward(mode='train')[0]: the mean CRF negative log-likelihood."""
    seq_out = bert_encoder(params, token_ids, attention_masks, token_type_ids, heads, linear_fn)
    tokens_loss = head_crf_fn(seq_out, params["mid_w"], params["mid_b"],
                              params["cls_w"], params["cls_b"],
                              labels, attention_masks,
                              params["crf_start"], params["crf_trans"], params["crf_end"])
    return tokens_loss


def make_params(key, *, vocab, type_vocab, max_pos, hidden, inter, layers, mid, tags):
    keys = iter(jax.random.split(key, 64))

    def nrm(shape, std=0.02):
        return (std * jax.random.normal(next(keys), shape)).astype(jnp.float32)

    p = {
        "word_emb": nrm((vocab, hidden)),
        "pos_emb": nrm((max_pos, hidden)),
        "type_emb": nrm((type_vocab, hidden)),
        "emb_ln_g": jnp.ones((hidden,), jnp.float32),
        "emb_ln_b": jnp.zeros((hidden,), jnp.float32),
        "layers": [],
        # mid_linear / classifier: biases zero-initialised as in _init_weights
        "mid_w": nrm((hidden, mid)),
        "mid_b": jnp.zeros((mid,), jnp.float32),
        "cls_w": nrm((mid, tags)),
        "cls_b": jnp.zeros((tags,), jnp.float32),
        # torchcrf init: uniform(-0.1, 0.1)
        "crf_start": jax.random.uniform(next(keys), (tags,), minval=-0.1, maxval=0.1),
        "crf_end": jax.random.uniform(next(keys), (tags,), minval=-0.1, maxval=0.1),
        "crf_trans": jax.random.uniform(next(keys), (tags, tags), minval=-0.1, maxval=0.1),
    }
    for _ in range(layers):
        p["layers"].append({
            "wq": nrm((hidden, hidden)), "bq": jnp.zeros((hidden,), jnp.float32),
            "wk": nrm((hidden, hidden)), "bk": jnp.zeros((hidden,), jnp.float32),
            "wv": nrm((hidden, hidden)), "bv": jnp.zeros((hidden,), jnp.float32),
            "wo": nrm((hidden, hidden)), "bo": jnp.zeros((hidden,), jnp.float32),
            "ln1_g": jnp.ones((hidden,), jnp.float32), "ln1_b": jnp.zeros((hidden,), jnp.float32),
            "wi": nrm((hidden, inter)), "bi": jnp.zeros((inter,), jnp.float32),
            "wf": nrm((inter, hidden)), "bf": jnp.zeros((hidden,), jnp.float32),
            "ln2_g": jnp.ones((hidden,), jnp.float32), "ln2_b": jnp.zeros((hidden,), jnp.float32),
        })
    return p


if __name__ == "__main__":
    B, S = 2, 8
    H, HEADS, INTER, LAYERS = 32, 2, 64, 2
    VOCAB, TYPE_VOCAB, MID, TAGS = 100, 2, 128, 8

    key = jax.random.PRNGKey(0)
    pkey, dkey = jax.random.split(key)
    params = make_params(pkey, vocab=VOCAB, type_vocab=TYPE_VOCAB, max_pos=S,
                         hidden=H, inter=INTER, layers=LAYERS, mid=MID, tags=TAGS)

    k1, k2 = jax.random.split(dkey)
    token_ids = jax.random.randint(k1, (B, S), 0, VOCAB, dtype=jnp.int32)
    token_type_ids = jnp.zeros((B, S), jnp.int32)
    lengths = jnp.array([S, 5], dtype=jnp.int32)            # torchcrf needs mask[:, 0] == 1
    attention_masks = (jnp.arange(S)[None, :] < lengths[:, None]).astype(jnp.int32)
    labels = jax.random.randint(k2, (B, S), 0, TAGS, dtype=jnp.int32)

    # Pallas path: Pallas linear kernels in the encoder + fused head/CRF kernel.
    loss = crf_model_forward(params, token_ids, attention_masks,
                             token_type_ids, labels, heads=HEADS)
    jax.block_until_ready(loss)

    # Pure-JAX reference (same bf16-operand / cast math, reference CRF).
    loss_ref = crf_model_forward(params, token_ids, attention_masks,
                                 token_type_ids, labels, heads=HEADS,
                                 linear_fn=jnp_linear, head_crf_fn=crf_head_loss_ref)
    np.testing.assert_allclose(np.asarray(loss), np.asarray(loss_ref),
                               rtol=5e-3, atol=5e-3)
    print("KERNEL_OK")
</pallas_src>

<mosaic_0001>
module attributes {stable_mosaic.version = 11 : i64} {
  func.func @_linear_kernel(%arg0: i32, %arg1: i32, %arg2: i32, %arg3: memref<128x128xbf16, #tpu.memory_space<vmem>>, %arg4: memref<128x128xbf16, #tpu.memory_space<vmem>>, %arg5: memref<1x128xf32, #tpu.memory_space<vmem>>, %arg6: memref<128x128xbf16, #tpu.memory_space<vmem>>, %arg7: memref<128x128xf32, #tpu.memory_space<vmem>>) attributes {dimension_semantics = [#tpu.dimension_semantics<parallel>, #tpu.dimension_semantics<parallel>, #tpu.dimension_semantics<arbitrary>], iteration_bounds = array<i64: 1, 1, 1>, scalar_prefetch = 0 : i64, scratch_operands = 1 : i64, tpu.core_type = #tpu.core_type<tc>, window_params = [{transform_indices = @transform_0, window_bounds = array<i64: 128, 128>}, {transform_indices = @transform_1, window_bounds = array<i64: 128, 128>}, {transform_indices = @transform_2, window_bounds = array<i64: 1, 128>}, {transform_indices = @transform_3, window_bounds = array<i64: 128, 128>}]} {
    %c0_i32 = arith.constant 0 : i32
    %0 = arith.cmpi eq, %arg2, %c0_i32 : i32
    %1 = arith.extui %0 : i1 to i32
    %c0_i32_0 = arith.constant 0 : i32
    %2 = arith.cmpi ne, %1, %c0_i32_0 : i32
    scf.if %2 {
      %cst_10 = arith.constant 0.000000e+00 : f32
      %12 = vector.broadcast %cst_10 : f32 to vector<128x128xf32>
      %c0_11 = arith.constant 0 : index
      %c0_12 = arith.constant 0 : index
      %13 = vector.load %arg7[%c0_11, %c0_12] : memref<128x128xf32, #tpu.memory_space<vmem>>, vector<128x128xf32>
      tpu.vector_store %arg7[%c0_11, %c0_12], %12 {strides = array<i32>} : memref<128x128xf32, #tpu.memory_space<vmem>>, vector<128x128xf32>,
    } else {
    }
    %c0 = arith.constant 0 : index
    %c0_1 = arith.constant 0 : index
    %3 = vector.load %arg7[%c0, %c0_1] : memref<128x128xf32, #tpu.memory_space<vmem>>, vector<128x128xf32>
    %c0_2 = arith.constant 0 : index
    %c0_3 = arith.constant 0 : index
    %4 = vector.load %arg3[%c0_2, %c0_3] : memref<128x128xbf16, #tpu.memory_space<vmem>>, vector<128x128xbf16>
    %c0_4 = arith.constant 0 : index
    %c0_5 = arith.constant 0 : index
    %5 = vector.load %arg4[%c0_4, %c0_5] : memref<128x128xbf16, #tpu.memory_space<vmem>>, vector<128x128xbf16>
    %cst = arith.constant dense<0.000000e+00> : vector<128x128xf32>
    %6 = tpu.matmul %4, %5, %cst {dimension_numbers = #tpu.dot_dimension_numbers<[1], [0], [0], [1], [0, 0, 1, 1], [], []>} : vector<128x128xbf16>, vector<128x128xbf16>, vector<128x128xf32> -> vector<128x128xf32>
    %7 = arith.addf %3, %6 : vector<128x128xf32>
    %c0_6 = arith.constant 0 : index
    %c0_7 = arith.constant 0 : index
    %8 = vector.load %arg7[%c0_6, %c0_7] : memref<128x128xf32, #tpu.memory_space<vmem>>, vector<128x128xf32>
    tpu.vector_store %arg7[%c0_6, %c0_7], %7 {strides = array<i32>} : memref<128x128xf32, #tpu.memory_space<vmem>>, vector<128x128xf32>,
    %c0_i32_8 = arith.constant 0 : i32
    %9 = arith.cmpi eq, %arg2, %c0_i32_8 : i32
    %10 = arith.extui %9 : i1 to i32
    %c0_i32_9 = arith.constant 0 : i32
    %11 = arith.cmpi ne, %10, %c0_i32_9 : i32
    scf.if %11 {
      %c0_10 = arith.constant 0 : index
      %c0_11 = arith.constant 0 : index
      %12 = vector.load %arg7[%c0_10, %c0_11] : memref<128x128xf32, #tpu.memory_space<vmem>>, vector<128x128xf32>
      %c0_12 = arith.constant 0 : index
      %c0_13 = arith.constant 0 : index
      %13 = vector.load %arg5[%c0_12, %c0_13] : memref<1x128xf32, #tpu.memory_space<vmem>>, vector<1x128xf32>
      %14 = vector.broadcast %13 : vector<1x128xf32> to vector<128x128xf32>
      %15 = arith.addf %12, %14 : vector<128x128xf32>
      %16 = arith.truncf %15 : vector<128x128xf32> to vector<128x128xbf16>
      %c0_14 = arith.constant 0 : index
      %c0_15 = arith.constant 0 : index
      %17 = vector.load %arg6[%c0_14, %c0_15] : memref<128x128xbf16, #tpu.memory_space<vmem>>, vector<128x128xbf16>
      tpu.vector_store %arg6[%c0_14, %c0_15], %16 {strides = array<i32>} : memref<128x128xbf16, #tpu.memory_space<vmem>>, vector<128x128xbf16>,
    } else {
    }
    return
  }
  func.func @transform_0(%arg0: i32, %arg1: i32, %arg2: i32) -> (i32, i32) {
    %c0_i32 = arith.constant 0 : i32
    return %arg0, %arg2 : i32, i32
  }
  func.func @transform_1(%arg0: i32, %arg1: i32, %arg2: i32) -> (i32, i32) {
    %c0_i32 = arith.constant 0 : i32
    return %arg2, %arg1 : i32, i32
  }
  func.func @transform_2(%arg0: i32, %arg1: i32, %arg2: i32) -> (i32, i32) {
    %c0_i32 = arith.constant 0 : i32
    %c0_i32_0 = arith.constant 0 : i32
    return %c0_i32, %arg1 : i32, i32
  }
  func.func @transform_3(%arg0: i32, %arg1: i32, %arg2: i32) -> (i32, i32) {
    %c0_i32 = arith.constant 0 : i32
    return %arg0, %arg1 : i32, i32
  }
}

</mosaic_0001>

<llo_original>
// kernel: tpu_custom_call.1
$region0: #{tpu_custom_call.1}
  #allocation0 [shape = 'u32[]', space=smem, size = 0x4, offset = 0x4, fixed_abs, tag = 'smem constant byte address 0x4 - core index']
  #allocation1 [shape = 'u32[144,128]{1,0:T(1,128)}', space=vmem, size = 0x12000, scoped, tag = 'internal scratch']
  #allocation2 [shape = 'f32[128,128]{1,0:T(8,128)}', space=vmem, size = 0x10000, scoped, tag = 'scratch operand']
  %s0 = inlined_call_operand.hbm [shape: bf16[128,128], index: 0, kind: input, shape index: {}]
  %s1 = inlined_call_operand.hbm [shape: bf16[128,128], index: 1, kind: input, shape index: {}]
  %s2 = inlined_call_operand.vmem [shape: f32[1,128], index: 2, kind: input, shape index: {}]
  %s3 = inlined_call_operand.hbm [shape: bf16[128,128], index: 3, kind: output, shape index: {}]
  %s4 = sld [smem:[#allocation0]]
  $region38: #{tpu_custom_call.1} parent=0
    _
  %s6 = ssub.s32 1, %s4
  %s7 = scalar_select 0, %s6, %s4
  $region1: #{tpu_custom_call.1} parent=0
    #allocation3 [shape = 'u8[32768]{0}', space=vmem, size = 0x8000, scoped, tag = 'input window, operand 0, single buffered']
    #allocation4 [shape = 's32[1]{0}', space=sflag, size = 0x4, scoped, tag = 'scoped memory for tpu_custom_call.1']
    #allocation5 [shape = 's32[1]{0}', space=sflag, size = 0x4, scoped, tag = 'scoped memory for tpu_custom_call.1']
    #allocation6 [shape = 'u8[32768]{0}', space=vmem, size = 0x8000, scoped, tag = 'input window, operand 1, single buffered']
    #allocation7 [shape = 's32[1]{0}', space=sflag, size = 0x4, scoped, tag = 'scoped memory for tpu_custom_call.1']
    #allocation8 [shape = 'u8[32768]{0}', space=vmem, size = 0x8000, scoped, tag = 'output window, operand 0, single buffered']
    %8 = vsyncpa [#allocation4], 0
    %9 = vsyncpa [#allocation7], 0
    %10 = vsyncpa [#allocation5], 0
    // Predicated region
    $region2: #{tpu_custom_call.1} parent=1 // pred_check
      _
    $region3: #{tpu_custom_call.1} parent=1 // pred_check_branch
      %12 = sbr.rel (0) target = $region5
    $region4: #{tpu_custom_call.1} parent=1 // pred_region
      %s14 = ssub.s32 1024, 1024
      %15 = vsyncadd [#allocation4], %s14
      %s16 = sshll.u32 [#allocation3], 4
      %s17 = int_to_ptr.vmem [resolvable:$true] %s16
      %22 = dma.hbm_to_vmem [thread:$0]  %s0, 1024, %s17, [#allocation4], 64, 64, 4
    $region5: #{tpu_custom_call.1} parent=1 // pred_fallthru
      _
    // Predicated region
    $region6: #{tpu_custom_call.1} parent=1 // pred_check
      _
    $region7: #{tpu_custom_call.1} parent=1 // pred_check_branch
      %24 = sbr.rel (0) target = $region9
    $region8: #{tpu_custom_call.1} parent=1 // pred_region
      %s26 = ssub.s32 1024, 1024
      %27 = vsyncadd [#allocation7], %s26
      %s28 = sshll.u32 [#allocation6], 4
      %s29 = int_to_ptr.vmem [resolvable:$true] %s28
      %34 = dma.hbm_to_vmem [thread:$0]  %s1, 1024, %s29, [#allocation7], 64, 64, 4
    $region9: #{tpu_custom_call.1} parent=1 // pred_fallthru
      _
    // Predicated region
    $region10: #{tpu_custom_call.1} parent=1 // pred_check
      _
    $region11: #{tpu_custom_call.1} parent=1 // pred_check_branch
      %36 = sbr.rel (0) target = $region13
    $region12: #{tpu_custom_call.1} parent=1 // pred_region
      _
    $region13: #{tpu_custom_call.1} parent=1 // pred_fallthru
      _
    // Predicated region
    $region14: #{tpu_custom_call.1} parent=1 // pred_check
      _
    $region15: #{tpu_custom_call.1} parent=1 // pred_check_branch
      %38 = sbr.rel (0) target = $region17
    $region16: #{tpu_custom_call.1} parent=1 // pred_region
      %39 = dma.done [#allocation4], 1024
    $region17: #{tpu_custom_call.1} parent=1 // pred_fallthru
      _
    // Predicated region
    $region18: #{tpu_custom_call.1} parent=1 // pred_check
      _
    $region19: #{tpu_custom_call.1} parent=1 // pred_check_branch
      %41 = sbr.rel (0) target = $region21
    $region20: #{tpu_custom_call.1} parent=1 // pred_region
      %42 = dma.done [#allocation7], 1024
    $region21: #{tpu_custom_call.1} parent=1 // pred_fallthru
      _
    %p44 = scmp.eq.s32.totalorder 0, 0
    // Predicated region
    $region22: #{tpu_custom_call.1} parent=1 // pred_check
      %p45 = pneg %p44
    $region23: #{tpu_custom_call.1} parent=1 // pred_check_branch
      %47 = sbr.rel (%p45) target = $region25
    $region24: #{tpu_custom_call.1} parent=1 // pred_region
      %48 = vst [vmem:[#allocation2] sm:$0xff] 0.0
      %49 = vst [vmem:[#allocation2 + $0x8] sm:$0xff] 0.0
      %50 = vst [vmem:[#allocation2 + $0x10] sm:$0xff] 0.0
      %51 = vst [vmem:[#allocation2 + $0x18] sm:$0xff] 0.0
      %52 = vst [vmem:[#allocation2 + $0x20] sm:$0xff] 0.0
      %53 = vst [vmem:[#allocation2 + $0x28] sm:$0xff] 0.0
      %54 = vst [vmem:[#allocation2 + $0x30] sm:$0xff] 0.0
      %55 = vst [vmem:[#allocation2 + $0x38] sm:$0xff] 0.0
      %56 = vst [vmem:[#allocation2 + $0x40] sm:$0xff] 0.0
      %57 = vst [vmem:[#allocation2 + $0x48] sm:$0xff] 0.0
      %58 = vst [vmem:[#allocation2 + $0x50] sm:$0xff] 0.0
      %59 = vst [vmem:[#allocation2 + $0x58] sm:$0xff] 0.0
      %60 = vst [vmem:[#allocation2 + $0x60] sm:$0xff] 0.0
      %61 = vst [vmem:[#allocation2 + $0x68] sm:$0xff] 0.0
      %62 = vst [vmem:[#allocation2 + $0x70] sm:$0xff] 0.0
      %63 = vst [vmem:[#allocation2 + $0x78] sm:$0xff] 0.0
    $region25: #{tpu_custom_call.1} parent=1 // pred_fallthru
      _
    %v64 = vld [vmem:[#allocation2] sm:$0xff]
    %v65 = vld [vmem:[#allocation2 + $0x8] sm:$0xff]
    %v66 = vld [vmem:[#allocation2 + $0x10] sm:$0xff]
    %v67 = vld [vmem:[#allocation2 + $0x18] sm:$0xff]
    %v68 = vld [vmem:[#allocation2 + $0x20] sm:$0xff]
    %v69 = vld [vmem:[#allocation2 + $0x28] sm:$0xff]
    %v70 = vld [vmem:[#allocation2 + $0x30] sm:$0xff]
    %v71 = vld [vmem:[#allocation2 + $0x38] sm:$0xff]
    %v72 = vld [vmem:[#allocation2 + $0x40] sm:$0xff]
    %v73 = vld [vmem:[#allocation2 + $0x48] sm:$0xff]
    %v74 = vld [vmem:[#allocation2 + $0x50] sm:$0xff]
    %v75 = vld [vmem:[#allocation2 + $0x58] sm:$0xff]
    %v76 = vld [vmem:[#allocation2 + $0x60] sm:$0xff]
    %v77 = vld [vmem:[#allocation2 + $0x68] sm:$0xff]
    %v78 = vld [vmem:[#allocation2 + $0x70] sm:$0xff]
    %v79 = vld [vmem:[#allocation2 + $0x78] sm:$0xff]
    %v80 = vld [vmem:[#allocation3] sm:$0xf]
    %v81 = vld [vmem:[#allocation3 + $0x4] sm:$0xf]
    %v82 = vld [vmem:[#allocation3 + $0x8] sm:$0xf]
    %v83 = vld [vmem:[#allocation3 + $0xc] sm:$0xf]
    %v84 = vld [vmem:[#allocation3 + $0x10] sm:$0xf]
    %v85 = vld [vmem:[#allocation3 + $0x14] sm:$0xf]
    %v86 = vld [vmem:[#allocation3 + $0x18] sm:$0xf]
    %v87 = vld [vmem:[#allocation3 + $0x1c] sm:$0xf]
    %v88 = vld [vmem:[#allocation3 + $0x20] sm:$0xf]
    %v89 = vld [vmem:[#allocation3 + $0x24] sm:$0xf]
    %v90 = vld [vmem:[#allocation3 + $0x28] sm:$0xf]
    %v91 = vld [vmem:[#allocation3 + $0x2c] sm:$0xf]
    %v92 = vld [vmem:[#allocation3 + $0x30] sm:$0xf]
    %v93 = vld [vmem:[#allocation3 + $0x34] sm:$0xf]
    %v94 = vld [vmem:[#allocation3 + $0x38] sm:$0xf]
    %v95 = vld [vmem:[#allocation3 + $0x3c] sm:$0xf]
    %v96 = vld [vmem:[#allocation6] sm:$0xf]
    %v97 = vld [vmem:[#allocation6 + $0x4] sm:$0xf]
    %v98 = vld [vmem:[#allocation6 + $0x8] sm:$0xf]
    %v99 = vld [vmem:[#allocation6 + $0xc] sm:$0xf]
    %v100 = vld [vmem:[#allocation6 + $0x10] sm:$0xf]
    %v101 = vld [vmem:[#allocation6 + $0x14] sm:$0xf]
    %v102 = vld [vmem:[#allocation6 + $0x18] sm:$0xf]
    %v103 = vld [vmem:[#allocation6 + $0x1c] sm:$0xf]
    %v104 = vld [vmem:[#allocation6 + $0x20] sm:$0xf]
    %v105 = vld [vmem:[#allocation6 + $0x24] sm:$0xf]
    %v106 = vld [vmem:[#allocation6 + $0x28] sm:$0xf]
    %v107 = vld [vmem:[#allocation6 + $0x2c] sm:$0xf]
    %v108 = vld [vmem:[#allocation6 + $0x30] sm:$0xf]
    %v109 = vld [vmem:[#allocation6 + $0x34] sm:$0xf]
    %v110 = vld [vmem:[#allocation6 + $0x38] sm:$0xf]
    %v111 = vld [vmem:[#allocation6 + $0x3c] sm:$0xf]
    %v128 = vunpack.c.l.b16 %v80
    %v129 = vunpack.c.l.b16 %v81
    %v130 = vunpack.c.l.b16 %v82
    %v131 = vunpack.c.l.b16 %v83
    %v132 = vunpack.c.l.b16 %v84
    %v133 = vunpack.c.l.b16 %v85
    %v134 = vunpack.c.l.b16 %v86
    %v135 = vunpack.c.l.b16 %v87
    %v136 = vunpack.c.l.b16 %v88
    %v137 = vunpack.c.l.b16 %v89
    %v138 = vunpack.c.l.b16 %v90
    %v139 = vunpack.c.l.b16 %v91
    %v140 = vunpack.c.l.b16 %v92
    %v141 = vunpack.c.l.b16 %v93
    %v142 = vunpack.c.l.b16 %v94
    %v143 = vunpack.c.l.b16 %v95
    %v144 = vpack.c.b16 %v129, %v128
    %v145 = vpack.c.b16 %v131, %v130
    %v146 = vpack.c.b16 %v133, %v132
    %v147 = vpack.c.b16 %v135, %v134
    %v148 = vpack.c.b16 %v137, %v136
    %v149 = vpack.c.b16 %v139, %v138
    %v150 = vpack.c.b16 %v141, %v140
    %v151 = vpack.c.b16 %v143, %v142
    %v176 = vunpack.c.l.b16 %v96
    %v177 = vunpack.c.l.b16 %v97
    %v178 = vunpack.c.l.b16 %v98
    %v179 = vunpack.c.l.b16 %v99
    %v180 = vunpack.c.l.b16 %v100
    %v181 = vunpack.c.l.b16 %v101
    %v182 = vunpack.c.l.b16 %v102
    %v183 = vunpack.c.l.b16 %v103
    %v184 = vunpack.c.l.b16 %v104
    %v185 = vunpack.c.l.b16 %v105
    %v186 = vunpack.c.l.b16 %v106
    %v187 = vunpack.c.l.b16 %v107
    %v188 = vunpack.c.l.b16 %v108
    %v189 = vunpack.c.l.b16 %v109
    %v190 = vunpack.c.l.b16 %v110
    %v191 = vunpack.c.l.b16 %v111
    %v192 = vpack.c.b16 %v177, %v176
    %v193 = vpack.c.b16 %v179, %v178
    %v194 = vpack.c.b16 %v181, %v180
    %v195 = vpack.c.b16 %v183, %v182
    %v196 = vpack.c.b16 %v185, %v184
    %v197 = vpack.c.b16 %v187, %v186
    %v198 = vpack.c.b16 %v189, %v188
    %v199 = vpack.c.b16 %v191, %v190
    %208 = vmatprep.subr.bf16.mxu0 0
    %209 = vmatpush1.bf16.msra.mxu0 %v192
    %210 = vmatprep.subr.bf16.mxu0 0
    %211 = vmatpush1.bf16.msra.mxu0 %v193
    %212 = vmatprep.subr.bf16.mxu0 0
    %213 = vmatpush1.bf16.msra.mxu0 %v194
    %214 = vmatprep.subr.bf16.mxu0 0
    %215 = vmatpush1.bf16.msra.mxu0 %v195
    %216 = vmatprep.subr.bf16.mxu0 0
    %217 = vmatpush1.bf16.msra.mxu0 %v196
    %218 = vmatprep.subr.bf16.mxu0 0
    %219 = vmatpush1.bf16.msra.mxu0 %v197
    %220 = vmatprep.subr.bf16.mxu0 0
    %221 = vmatpush1.bf16.msra.mxu0 %v198
    %222 = vmatprep.subr.bf16.mxu0 0
    %223 = vmatpush1.bf16.msra.mxu0 %v199
    %224 = vmatprep.subr.bf16.mxu0 0
    %225 = vmatpush1.bf16.msra.mxu0 0
    %226 = vmatprep.subr.bf16.mxu0 0
    %227 = vmatpush1.bf16.msra.mxu0 0
    %228 = vmatprep.subr.bf16.mxu0 0
    %229 = vmatpush1.bf16.msra.mxu0 0
    %230 = vmatprep.subr.bf16.mxu0 0
    %231 = vmatpush1.bf16.msra.mxu0 0
    %232 = vmatprep.subr.bf16.mxu0 0
    %233 = vmatpush1.bf16.msra.mxu0 0
    %234 = vmatprep.subr.bf16.mxu0 0
    %235 = vmatpush1.bf16.msra.mxu0 0
    %236 = vmatprep.subr.bf16.mxu0 0
    %237 = vmatpush1.bf16.msra.mxu0 0
    %238 = vmatprep.subr.bf16.mxu0 0
    %239 = vmatpush1.bf16.msra.mxu0 0
    %240 = vmatprep.mubr.bf16.mxu0 0
    %241 = vmatmul.mubr.bf16.gmra.mrb[0].mxu0 %v144
    %v242 = vpop.f32.mrb[0].mxu0
    %v243 = vadd.f32 0.0, %v242
    %v244 = vpop.f32.mrb[0].mxu0
    %v245 = vpop.f32.mrb[0].mxu0
    %v246 = vadd.f32 0.0, %v245
    %v247 = vpop.f32.mrb[0].mxu0
    %248 = vmatprep.mubr.bf16.mxu0 0
    %249 = vmatmul.mubr.bf16.gmra.mrb[0].mxu0 %v145
    %v250 = vpop.f32.mrb[0].mxu0
    %v251 = vadd.f32 0.0, %v250
    %v252 = vpop.f32.mrb[0].mxu0
    %v253 = vpop.f32.mrb[0].mxu0
    %v254 = vadd.f32 0.0, %v253
    %v255 = vpop.f32.mrb[0].mxu0
    %256 = vmatprep.mubr.bf16.mxu0 0
    %257 = vmatmul.mubr.bf16.gmra.mrb[0].mxu0 %v146
    %v258 = vpop.f32.mrb[0].mxu0
    %v259 = vadd.f32 0.0, %v258
    %v260 = vpop.f32.mrb[0].mxu0
    %v261 = vpop.f32.mrb[0].mxu0
    %v262 = vadd.f32 0.0, %v261
    %v263 = vpop.f32.mrb[0].mxu0
    %264 = vmatprep.mubr.bf16.mxu0 0
    %265 = vmatmul.mubr.bf16.gmra.mrb[0].mxu0 %v147
    %v266 = vpop.f32.mrb[0].mxu0
    %v267 = vadd.f32 0.0, %v266
    %v268 = vpop.f32.mrb[0].mxu0
    %v269 = vpop.f32.mrb[0].mxu0
    %v270 = vadd.f32 0.0, %v269
    %v271 = vpop.f32.mrb[0].mxu0
    %272 = vmatprep.mubr.bf16.mxu0 0
    %273 = vmatmul.mubr.bf16.gmra.mrb[0].mxu0 %v148
    %v274 = vpop.f32.mrb[0].mxu0
    %v275 = vadd.f32 0.0, %v274
    %v276 = vpop.f32.mrb[0].mxu0
    %v277 = vpop.f32.mrb[0].mxu0
    %v278 = vadd.f32 0.0, %v277
    %v279 = vpop.f32.mrb[0].mxu0
    %280 = vmatprep.mubr.bf16.mxu0 0
    %281 = vmatmul.mubr.bf16.gmra.mrb[0].mxu0 %v149
    %v282 = vpop.f32.mrb[0].mxu0
    %v283 = vadd.f32 0.0, %v282
    %v284 = vpop.f32.mrb[0].mxu0
    %v285 = vpop.f32.mrb[0].mxu0
    %v286 = vadd.f32 0.0, %v285
    %v287 = vpop.f32.mrb[0].mxu0
    %288 = vmatprep.mubr.bf16.mxu0 0
    %289 = vmatmul.mubr.bf16.gmra.mrb[0].mxu0 %v150
    %v290 = vpop.f32.mrb[0].mxu0
    %v291 = vadd.f32 0.0, %v290
    %v292 = vpop.f32.mrb[0].mxu0
    %v293 = vpop.f32.mrb[0].mxu0
    %v294 = vadd.f32 0.0, %v293
    %v295 = vpop.f32.mrb[0].mxu0
    %296 = vmatprep.mubr.bf16.mxu0 0
    %297 = vmatmul.mubr.bf16.gmra.mrb[0].mxu0 %v151
    %v298 = vpop.f32.mrb[0].mxu0
    %v299 = vadd.f32 0.0, %v298
    %v300 = vpop.f32.mrb[0].mxu0
    %v301 = vpop.f32.mrb[0].mxu0
    %v302 = vadd.f32 0.0, %v301
    %v303 = vpop.f32.mrb[0].mxu0
    %304 = vdwg.mxu0
    %v305 = vadd.f32 %v64, %v243
    %v306 = vadd.f32 %v65, %v246
    %v307 = vadd.f32 %v66, %v251
    %v308 = vadd.f32 %v67, %v254
    %v309 = vadd.f32 %v68, %v259
    %v310 = vadd.f32 %v69, %v262
    %v311 = vadd.f32 %v70, %v267
    %v312 = vadd.f32 %v71, %v270
    %v313 = vadd.f32 %v72, %v275
    %v314 = vadd.f32 %v73, %v278
    %v315 = vadd.f32 %v74, %v283
    %v316 = vadd.f32 %v75, %v286
    %v317 = vadd.f32 %v76, %v291
    %v318 = vadd.f32 %v77, %v294
    %v319 = vadd.f32 %v78, %v299
    %v320 = vadd.f32 %v79, %v302
    %321 = vst [vmem:[#allocation2] sm:$0xff] %v305
    %322 = vst [vmem:[#allocation2 + $0x8] sm:$0xff] %v306
    %323 = vst [vmem:[#allocation2 + $0x10] sm:$0xff] %v307
    %324 = vst [vmem:[#allocation2 + $0x18] sm:$0xff] %v308
    %325 = vst [vmem:[#allocation2 + $0x20] sm:$0xff] %v309
    %326 = vst [vmem:[#allocation2 + $0x28] sm:$0xff] %v310
    %327 = vst [vmem:[#allocation2 + $0x30] sm:$0xff] %v311
    %328 = vst [vmem:[#allocation2 + $0x38] sm:$0xff] %v312
    %329 = vst [vmem:[#allocation2 + $0x40] sm:$0xff] %v313
    %330 = vst [vmem:[#allocation2 + $0x48] sm:$0xff] %v314
    %331 = vst [vmem:[#allocation2 + $0x50] sm:$0xff] %v315
    %332 = vst [vmem:[#allocation2 + $0x58] sm:$0xff] %v316
    %333 = vst [vmem:[#allocation2 + $0x60] sm:$0xff] %v317
    %334 = vst [vmem:[#allocation2 + $0x68] sm:$0xff] %v318
    %335 = vst [vmem:[#allocation2 + $0x70] sm:$0xff] %v319
    %336 = vst [vmem:[#allocation2 + $0x78] sm:$0xff] %v320
    // Predicated region
    $region26: #{tpu_custom_call.1} parent=1 // pred_check
      %p337 = pneg %p44
    $region27: #{tpu_custom_call.1} parent=1 // pred_check_branch
      %339 = sbr.rel (%p337) target = $region29
    $region28: #{tpu_custom_call.1} parent=1 // pred_region
      %v340 = vld [vmem:[#allocation2] sm:$0xff]
      %v341 = vld [vmem:[#allocation2 + $0x8] sm:$0xff]
      %v342 = vld [vmem:[#allocation2 + $0x10] sm:$0xff]
      %v343 = vld [vmem:[#allocation2 + $0x18] sm:$0xff]
      %v344 = vld [vmem:[#allocation2 + $0x20] sm:$0xff]
      %v345 = vld [vmem:[#allocation2 + $0x28] sm:$0xff]
      %v346 = vld [vmem:[#allocation2 + $0x30] sm:$0xff]
      %v347 = vld [vmem:[#allocation2 + $0x38] sm:$0xff]
      %v348 = vld [vmem:[#allocation2 + $0x40] sm:$0xff]
      %v349 = vld [vmem:[#allocation2 + $0x48] sm:$0xff]
      %v350 = vld [vmem:[#allocation2 + $0x50] sm:$0xff]
      %v351 = vld [vmem:[#allocation2 + $0x58] sm:$0xff]
      %v352 = vld [vmem:[#allocation2 + $0x60] sm:$0xff]
      %v353 = vld [vmem:[#allocation2 + $0x68] sm:$0xff]
      %v354 = vld [vmem:[#allocation2 + $0x70] sm:$0xff]
      %v355 = vld [vmem:[#allocation2 + $0x78] sm:$0xff]
      %v356 = vld [vmem:[%s2] sm:$0x1]
      %v358 = vlaneseq
      %v359 = vshrl.u32 %v358, 7
      %v360 = vsub.s32 0, %v359
      %v361 = vrot.slane %v356, %v360
      %v363 = vadd.f32 %v340, %v361
      %v364 = vadd.f32 %v341, %v361
      %v365 = vadd.f32 %v342, %v361
      %v366 = vadd.f32 %v343, %v361
      %v367 = vadd.f32 %v344, %v361
      %v368 = vadd.f32 %v345, %v361
      %v369 = vadd.f32 %v346, %v361
      %v370 = vadd.f32 %v347, %v361
      %v371 = vadd.f32 %v348, %v361
      %v372 = vadd.f32 %v349, %v361
      %v373 = vadd.f32 %v350, %v361
      %v374 = vadd.f32 %v351, %v361
      %v375 = vadd.f32 %v352, %v361
      %v376 = vadd.f32 %v353, %v361
      %v377 = vadd.f32 %v354, %v361
      %v378 = vadd.f32 %v355, %v361
      %v379 = vpack.c.bf16 %v364, %v363
      %v380 = vpack.c.bf16 %v366, %v365
      %v381 = vpack.c.bf16 %v368, %v367
      %v382 = vpack.c.bf16 %v370, %v369
      %v383 = vpack.c.bf16 %v372, %v371
      %v384 = vpack.c.bf16 %v374, %v373
      %v385 = vpack.c.bf16 %v376, %v375
      %v386 = vpack.c.bf16 %v378, %v377
      %v395 = vunpack.c.l.b16 %v379
      %v396 = vunpack.c.h.b16 %v379
      %v397 = vunpack.c.l.b16 %v380
      %v398 = vunpack.c.h.b16 %v380
      %v399 = vunpack.c.l.b16 %v381
      %v400 = vunpack.c.h.b16 %v381
      %v401 = vunpack.c.l.b16 %v382
      %v402 = vunpack.c.h.b16 %v382
      %v403 = vunpack.c.l.b16 %v383
      %v404 = vunpack.c.h.b16 %v383
      %v405 = vunpack.c.l.b16 %v384
      %v406 = vunpack.c.h.b16 %v384
      %v407 = vunpack.c.l.b16 %v385
      %v408 = vunpack.c.h.b16 %v385
      %v409 = vunpack.c.l.b16 %v386
      %v410 = vunpack.c.h.b16 %v386
      %v411 = vpack.c.b16 %v395, %v395
      %v412 = vpack.c.b16 %v396, %v396
      %v413 = vpack.c.b16 %v397, %v397
      %v414 = vpack.c.b16 %v398, %v398
      %v415 = vpack.c.b16 %v399, %v399
      %v416 = vpack.c.b16 %v400, %v400
      %v417 = vpack.c.b16 %v401, %v401
      %v418 = vpack.c.b16 %v402, %v402
      %v419 = vpack.c.b16 %v403, %v403
      %v420 = vpack.c.b16 %v404, %v404
      %v421 = vpack.c.b16 %v405, %v405
      %v422 = vpack.c.b16 %v406, %v406
      %v423 = vpack.c.b16 %v407, %v407
      %v424 = vpack.c.b16 %v408, %v408
      %v425 = vpack.c.b16 %v409, %v409
      %v426 = vpack.c.b16 %v410, %v410
      %443 = vst [vmem:[#allocation8] sm:$0xf] %v411
      %444 = vst [vmem:[#allocation8 + $0x4] sm:$0xf] %v412
      %445 = vst [vmem:[#allocation8 + $0x8] sm:$0xf] %v413
      %446 = vst [vmem:[#allocation8 + $0xc] sm:$0xf] %v414
      %447 = vst [vmem:[#allocation8 + $0x10] sm:$0xf] %v415
      %448 = vst [vmem:[#allocation8 + $0x14] sm:$0xf] %v416
      %449 = vst [vmem:[#allocation8 + $0x18] sm:$0xf] %v417
      %450 = vst [vmem:[#allocation8 + $0x1c] sm:$0xf] %v418
      %451 = vst [vmem:[#allocation8 + $0x20] sm:$0xf] %v419
      %452 = vst [vmem:[#allocation8 + $0x24] sm:$0xf] %v420
      %453 = vst [vmem:[#allocation8 + $0x28] sm:$0xf] %v421
      %454 = vst [vmem:[#allocation8 + $0x2c] sm:$0xf] %v422
      %455 = vst [vmem:[#allocation8 + $0x30] sm:$0xf] %v423
      %456 = vst [vmem:[#allocation8 + $0x34] sm:$0xf] %v424
      %457 = vst [vmem:[#allocation8 + $0x38] sm:$0xf] %v425
      %458 = vst [vmem:[#allocation8 + $0x3c] sm:$0xf] %v426
    $region29: #{tpu_custom_call.1} parent=1 // pred_fallthru
      _
    // Predicated region
    $region30: #{tpu_custom_call.1} parent=1 // pred_check
      _
    $region31: #{tpu_custom_call.1} parent=1 // pred_check_branch
      %460 = sbr.rel (0) target = $region33
    $region32: #{tpu_custom_call.1} parent=1 // pred_region
      %s462 = ssub.s32 1024, 1024
      %463 = vsyncadd [#allocation5], %s462
      %s464 = sshll.u32 [#allocation8], 4
      %s465 = int_to_ptr.vmem [resolvable:$true] %s464
      %470 = dma.vmem_to_hbm [thread:$0]  %s465, 1024, %s3, [#allocation5], 64, 64, 4
    $region33: #{tpu_custom_call.1} parent=1 // pred_fallthru
      _
    // Predicated region
    $region34: #{tpu_custom_call.1} parent=1 // pred_check
      _
    $region35: #{tpu_custom_call.1} parent=1 // pred_check_branch
      %472 = sbr.rel (0) target = $region37
    $region36: #{tpu_custom_call.1} parent=1 // pred_region
      %473 = dma.done [#allocation5], 1024
    $region37: #{tpu_custom_call.1} parent=1 // pred_fallthru
      _
    %474 = vsyncpa [#allocation4], 1
    %475 = vsyncpa [#allocation7], 1
    %476 = vsyncpa [#allocation5], 1

</llo_original>
